<compile_context>
chip_gen: v7x
topology: tpu7x:2x2x1
jax: 0.10.0
libtpu: 0.0.40
codegen_flags: <defaults>
</compile_context>

<pallas_src>
import functools
import math

import jax
import jax.numpy as jnp
from jax import lax
from jax.experimental import pallas as pl
from jax.experimental.pallas import tpu as pltpu


def _round_up(n, m):
    return ((n + m - 1) // m) * m


def randmap_kernel(x_ref, w1_ref, b1_ref, w2_ref, b2_ref, o_ref, *,
                   hid_chunk, n_chunks):
    """Fused y = ReLU(ReLU(x@W1 + b1) @ W2 + b2) with the positive ReLU scales
    already folded into (W1,b1)/(W2,b2).  The hidden dim is processed in
    `hid_chunk`-wide column chunks so the live f32 intermediate stays at
    (tb, hid_chunk) regardless of hid size (keeps the kernel MXU-bound)."""
    x = x_ref[...].astype(jnp.bfloat16)            # bf16 cast in-kernel (MXU feed)
    tb = o_ref.shape[0]
    out_p = o_ref.shape[1]

    def chunk_body(c, acc):
        off = pl.multiple_of(c * hid_chunk, hid_chunk)
        # Layer 1 chunk: (tb, in) @ (in, chunk) on the MXU, f32 accumulation.
        h = jnp.dot(x, w1_ref[:, pl.ds(off, hid_chunk)],
                    preferred_element_type=jnp.float32)
        h = jnp.maximum(h + b1_ref[:, pl.ds(off, hid_chunk)], 0.0)
        # Layer 2 partial: accumulate (tb, chunk) @ (chunk, out) into f32 acc.
        return acc + jnp.dot(h.astype(jnp.bfloat16),
                             w2_ref[pl.ds(off, hid_chunk), :],
                             preferred_element_type=jnp.float32)

    acc = lax.fori_loop(0, n_chunks, chunk_body,
                        jnp.zeros((tb, out_p), jnp.float32),
                        unroll=n_chunks <= 8)
    y = jnp.maximum(acc + b2_ref[...], 0.0)        # scale folded into W2/b2
    o_ref[...] = y.astype(o_ref.dtype)


def prepare_params(w1, b1, w2, b2, hid_shape, out_shape, *, align=256):
    """One-time parameter prep (hoisted out of the forward pass):
    fold the ReLU scales sqrt(2/hid), sqrt(2/out) into (W1,b1)/(W2,b2)
    (exact: ReLU(z)*s == ReLU(z*s) for s > 0), cast weights to bf16, and
    zero-pad the hid/out feature dims to `align` (256 fully feeds v6e/v7x's
    2x256x256 MXUs; still a multiple of 128 so v5e is unaffected).
    Zero padding is exact: padded hidden units give ReLU(0+0)=0 and the
    matching W2 rows are zero; padded output columns are sliced off."""
    in_f = w1.shape[0]
    hid_scale = math.sqrt(2.0 / hid_shape)
    out_scale = math.sqrt(2.0 / out_shape)
    hid_p = _round_up(hid_shape, align)
    out_p = _round_up(out_shape, align)
    w1p = jnp.zeros((in_f, hid_p), jnp.bfloat16).at[:, :hid_shape].set(
        (w1 * hid_scale).astype(jnp.bfloat16))
    b1p = jnp.zeros((1, hid_p), jnp.float32).at[0, :hid_shape].set(
        (b1 * hid_scale).astype(jnp.float32))
    w2p = jnp.zeros((hid_p, out_p), jnp.bfloat16).at[:hid_shape, :out_shape].set(
        (w2 * out_scale).astype(jnp.bfloat16))
    b2p = jnp.zeros((1, out_p), jnp.float32).at[0, :out_shape].set(
        (b2 * out_scale).astype(jnp.float32))
    return dict(w1=w1p, b1=b1p, w2=w2p, b2=b2p,
                in_f=in_f, hid=hid_shape, out=out_shape,
                hid_p=hid_p, out_p=out_p)


def randmap_forward(x, params, *, block_b=256, out_dtype=None, hid_chunk=512):
    """x: (B, in) f32; params: output of prepare_params() (called once)."""
    B, in_f = x.shape
    assert in_f == params["in_f"], "x feature dim mismatch"
    hid_p, out_p, out_f = params["hid_p"], params["out_p"], params["out"]
    out_dtype = x.dtype if out_dtype is None else jnp.dtype(out_dtype)
    out_bytes = jnp.dtype(out_dtype).itemsize

    # Guard block_b to a multiple of 8 (sublane rule) and pick tb so the
    # "parallel" batch grid has >= 2 tiles when B permits (v7x: 2 TensorCores
    # shard a parallel axis; no effect on single-TC v5e/v6e).  A partial last
    # tile is masked by Pallas, so no batch padding pass and little waste.
    block_b = max(8, (int(block_b) // 8) * 8)
    tb = min(block_b, _round_up(pl.cdiv(B, 2), 8))
    if tb >= B:
        tb = B                                  # one full-extent tile (always legal)
    grid = (pl.cdiv(B, tb),)

    # Hidden chunk: a multiple of 256 that divides hid_p (hid_p is 256-aligned).
    chunk = 256 * math.gcd(hid_p // 256, max(1, int(hid_chunk) // 256))
    n_chunks = hid_p // chunk

    kernel = functools.partial(randmap_kernel, hid_chunk=chunk, n_chunks=n_chunks)

    flops = 2 * B * (in_f * hid_p + hid_p * out_p)
    bytes_accessed = (B * in_f * x.dtype.itemsize            # x (f32, streamed)
                      + (in_f * hid_p + hid_p * out_p) * 2   # bf16 weights (once)
                      + (hid_p + out_p) * 4                  # f32 biases
                      + B * out_p * out_bytes)               # output writeback
    cost = pl.CostEstimate(flops=flops, transcendentals=0,
                           bytes_accessed=bytes_accessed)

    def run(weight_buffers):
        # VMEM budget: resident weights/biases x buffer count, double-buffered
        # x/out streams, and the in-kernel intermediates.
        budget = ((in_f * hid_p + hid_p * out_p) * 2 * weight_buffers   # bf16 W1+W2
                  + (hid_p + out_p) * 4 * weight_buffers                # biases
                  + 2 * tb * in_f * x.dtype.itemsize                    # x stream
                  + 2 * tb * out_p * out_bytes                          # out stream
                  + tb * chunk * (4 + 2) + tb * out_p * 4)              # h f32+bf16, acc
        assert budget < (64 << 20), (
            f"VMEM budget {budget / 2**20:.1f} MiB exceeds v7x's 64 MiB; "
            "shrink block_b / hid_chunk or add a grid axis over out columns.")
        vmem_limit = min(max(int(budget * 1.5) + (1 << 20), 32 << 20), 64 << 20)

        # Constant index maps => resident operands; single-buffer them when
        # supported (no pipelining benefit from a second buffer).
        weight_kw = ({} if weight_buffers == 2
                     else dict(pipeline_mode=pl.Buffered(weight_buffers)))
        in_specs = [
            pl.BlockSpec((tb, in_f), lambda i: (i, 0)),                    # x: streamed
            pl.BlockSpec((in_f, hid_p), lambda i: (0, 0), **weight_kw),    # W1 resident
            pl.BlockSpec((1, hid_p), lambda i: (0, 0), **weight_kw),       # b1 resident
            pl.BlockSpec((hid_p, out_p), lambda i: (0, 0), **weight_kw),   # W2 resident
            pl.BlockSpec((1, out_p), lambda i: (0, 0), **weight_kw),       # b2 resident
        ]
        return pl.pallas_call(
            kernel,
            out_shape=jax.ShapeDtypeStruct((B, out_p), out_dtype),
            grid_spec=pltpu.PrefetchScalarGridSpec(
                num_scalar_prefetch=0,
                grid=grid,
                in_specs=in_specs,
                out_specs=pl.BlockSpec((tb, out_p), lambda i: (i, 0)),
            ),
            compiler_params=pltpu.CompilerParams(
                dimension_semantics=("parallel",),
                vmem_limit_bytes=vmem_limit),
            cost_estimate=cost,
        )(x, params["w1"], params["b1"], params["w2"], params["b2"])

    try:
        out_padded = run(weight_buffers=1)
    except Exception:
        # pipeline_mode=pl.Buffered(1) not supported by this JAX build on the
        # pallas_call path: fall back to default double-buffered weights.
        out_padded = run(weight_buffers=2)

    return out_padded[:, :out_f]


def init_params(key, in_shape, hid_shape, out_shape):
    """Deterministic init mirroring the PyTorch module:
    kaiming_normal_(fan_in, relu) for weights, uniform(-1, 1) for biases."""
    k1, k2, k3, k4 = jax.random.split(key, 4)
    w1_t = jax.random.normal(k1, (hid_shape, in_shape), jnp.float32) * math.sqrt(2.0 / in_shape)
    w2_t = jax.random.normal(k2, (out_shape, hid_shape), jnp.float32) * math.sqrt(2.0 / hid_shape)
    b1 = jax.random.uniform(k3, (hid_shape,), jnp.float32, minval=-1.0, maxval=1.0)
    b2 = jax.random.uniform(k4, (out_shape,), jnp.float32, minval=-1.0, maxval=1.0)
    # Store weights transposed (in, out) for the kernel's x @ W convention.
    return w1_t.T, b1, w2_t.T, b2


def reference_forward(x, w1, b1, w2, b2, hid_shape, out_shape):
    h = jnp.maximum(x @ w1 + b1, 0.0) * math.sqrt(2.0 / hid_shape)
    y = jnp.maximum(h @ w2 + b2, 0.0) * math.sqrt(2.0 / out_shape)
    return y


if __name__ == "__main__":
    in_shape, hid_shape, out_shape = 32, 64, 32
    batch = 8

    key = jax.random.PRNGKey(0)
    kx, kp = jax.random.split(key)
    x = jax.random.normal(kx, (batch, in_shape), jnp.float32)
    w1, b1, w2, b2 = init_params(kp, in_shape, hid_shape, out_shape)

    params = prepare_params(w1, b1, w2, b2, hid_shape, out_shape)   # one-time prep
    out = randmap_forward(x, params)
    out = jax.block_until_ready(out)

    ref = reference_forward(x, w1, b1, w2, b2, hid_shape, out_shape)
    assert out.shape == (batch, out_shape)
    assert out.dtype == x.dtype
    # bf16 MXU operands with f32 accumulation -> loosened tolerance vs f32 ref.
    assert jnp.allclose(out, ref, atol=5e-2, rtol=5e-2), "mismatch vs reference"

    print("KERNEL_OK")
</pallas_src>

<mosaic_0001>
module attributes {stable_mosaic.version = 11 : i64} {
  func.func @randmap_kernel(%arg0: i32, %arg1: memref<8x32xf32, #tpu.memory_space<vmem>>, %arg2: memref<32x256xbf16, #tpu.memory_space<vmem>>, %arg3: memref<1x256xf32, #tpu.memory_space<vmem>>, %arg4: memref<256x256xbf16, #tpu.memory_space<vmem>>, %arg5: memref<1x256xf32, #tpu.memory_space<vmem>>, %arg6: memref<8x256xf32, #tpu.memory_space<vmem>>) attributes {dimension_semantics = [#tpu.dimension_semantics<parallel>], iteration_bounds = array<i64: 1>, scalar_prefetch = 0 : i64, scratch_operands = 0 : i64, tpu.core_type = #tpu.core_type<tc>, window_params = [{transform_indices = @transform_0, window_bounds = array<i64: 8, 32>}, {pipeline_mode = #tpu.pipeline_mode<synchronous>, transform_indices = @transform_1, window_bounds = array<i64: 32, 256>}, {pipeline_mode = #tpu.pipeline_mode<synchronous>, transform_indices = @transform_2, window_bounds = array<i64: 1, 256>}, {pipeline_mode = #tpu.pipeline_mode<synchronous>, transform_indices = @transform_3, window_bounds = array<i64: 256, 256>}, {pipeline_mode = #tpu.pipeline_mode<synchronous>, transform_indices = @transform_4, window_bounds = array<i64: 1, 256>}, {transform_indices = @transform_5, window_bounds = array<i64: 8, 256>}]} {
    %c0 = arith.constant 0 : index
    %c0_0 = arith.constant 0 : index
    %0 = vector.load %arg1[%c0, %c0_0] : memref<8x32xf32, #tpu.memory_space<vmem>>, vector<8x32xf32>
    %1 = arith.truncf %0 : vector<8x32xf32> to vector<8x32xbf16>
    %cst = arith.constant 0.000000e+00 : f32
    %2 = vector.broadcast %cst : f32 to vector<8x256xf32>
    %c0_i32 = arith.constant 0 : i32
    %c256_i32 = arith.constant 256 : i32
    %3 = arith.muli %c0_i32, %c256_i32 : i32
    %4 = tpu.assume_multiple %3, 256 : i32
    %c0_1 = arith.constant 0 : index
    %5 = arith.index_cast %4 : i32 to index
    %6 = vector.load %arg2[%c0_1, %5] : memref<32x256xbf16, #tpu.memory_space<vmem>>, vector<32x256xbf16>
    %cst_2 = arith.constant dense<0.000000e+00> : vector<8x256xf32>
    %7 = tpu.matmul %1, %6, %cst_2 {dimension_numbers = #tpu.dot_dimension_numbers<[1], [0], [0], [1], [0, 0, 1, 1], [], []>} : vector<8x32xbf16>, vector<32x256xbf16>, vector<8x256xf32> -> vector<8x256xf32>
    %c0_3 = arith.constant 0 : index
    %8 = arith.index_cast %4 : i32 to index
    %9 = vector.load %arg3[%c0_3, %8] : memref<1x256xf32, #tpu.memory_space<vmem>>, vector<1x256xf32>
    %10 = vector.broadcast %9 : vector<1x256xf32> to vector<8x256xf32>
    %11 = arith.addf %7, %10 : vector<8x256xf32>
    %cst_4 = arith.constant 0.000000e+00 : f32
    %12 = vector.broadcast %cst_4 : f32 to vector<8x256xf32>
    %13 = arith.maximumf %11, %12 : vector<8x256xf32>
    %14 = arith.truncf %13 : vector<8x256xf32> to vector<8x256xbf16>
    %15 = arith.index_cast %4 : i32 to index
    %c0_5 = arith.constant 0 : index
    %16 = vector.load %arg4[%15, %c0_5] : memref<256x256xbf16, #tpu.memory_space<vmem>>, vector<256x256xbf16>
    %cst_6 = arith.constant dense<0.000000e+00> : vector<8x256xf32>
    %17 = tpu.matmul %14, %16, %cst_6 {dimension_numbers = #tpu.dot_dimension_numbers<[1], [0], [0], [1], [0, 0, 1, 1], [], []>} : vector<8x256xbf16>, vector<256x256xbf16>, vector<8x256xf32> -> vector<8x256xf32>
    %18 = arith.addf %2, %17 : vector<8x256xf32>
    %c1_i32 = arith.constant 1 : i32
    %c0_7 = arith.constant 0 : index
    %c0_8 = arith.constant 0 : index
    %19 = vector.load %arg5[%c0_7, %c0_8] : memref<1x256xf32, #tpu.memory_space<vmem>>, vector<1x256xf32>
    %20 = vector.broadcast %19 : vector<1x256xf32> to vector<8x256xf32>
    %21 = arith.addf %18, %20 : vector<8x256xf32>
    %cst_9 = arith.constant 0.000000e+00 : f32
    %22 = vector.broadcast %cst_9 : f32 to vector<8x256xf32>
    %23 = arith.maximumf %21, %22 : vector<8x256xf32>
    %c0_10 = arith.constant 0 : index
    %c0_11 = arith.constant 0 : index
    %24 = vector.load %arg6[%c0_10, %c0_11] : memref<8x256xf32, #tpu.memory_space<vmem>>, vector<8x256xf32>
    tpu.vector_store %arg6[%c0_10, %c0_11], %23 {strides = array<i32>} : memref<8x256xf32, #tpu.memory_space<vmem>>, vector<8x256xf32>,
    return
  }
  func.func @transform_0(%arg0: i32) -> (i32, i32) {
    %c0_i32 = arith.constant 0 : i32
    %c0_i32_0 = arith.constant 0 : i32
    return %arg0, %c0_i32 : i32, i32
  }
  func.func @transform_1(%arg0: i32) -> (i32, i32) {
    %c0_i32 = arith.constant 0 : i32
    %c0_i32_0 = arith.constant 0 : i32
    %c0_i32_1 = arith.constant 0 : i32
    return %c0_i32, %c0_i32_0 : i32, i32
  }
  func.func @transform_2(%arg0: i32) -> (i32, i32) {
    %c0_i32 = arith.constant 0 : i32
    %c0_i32_0 = arith.constant 0 : i32
    %c0_i32_1 = arith.constant 0 : i32
    return %c0_i32, %c0_i32_0 : i32, i32
  }
  func.func @transform_3(%arg0: i32) -> (i32, i32) {
    %c0_i32 = arith.constant 0 : i32
    %c0_i32_0 = arith.constant 0 : i32
    %c0_i32_1 = arith.constant 0 : i32
    return %c0_i32, %c0_i32_0 : i32, i32
  }
  func.func @transform_4(%arg0: i32) -> (i32, i32) {
    %c0_i32 = arith.constant 0 : i32
    %c0_i32_0 = arith.constant 0 : i32
    %c0_i32_1 = arith.constant 0 : i32
    return %c0_i32, %c0_i32_0 : i32, i32
  }
  func.func @transform_5(%arg0: i32) -> (i32, i32) {
    %c0_i32 = arith.constant 0 : i32
    %c0_i32_0 = arith.constant 0 : i32
    return %arg0, %c0_i32 : i32, i32
  }
}

module attributes {stable_mosaic.version = 11 : i64} {
  func.func @randmap_kernel(%arg0: i32, %arg1: memref<8x32xf32, #tpu.memory_space<vmem>>, %arg2: memref<32x256xbf16, #tpu.memory_space<vmem>>, %arg3: memref<1x256xf32, #tpu.memory_space<vmem>>, %arg4: memref<256x256xbf16, #tpu.memory_space<vmem>>, %arg5: memref<1x256xf32, #tpu.memory_space<vmem>>, %arg6: memref<8x256xf32, #tpu.memory_space<vmem>>) attributes {dimension_semantics = [#tpu.dimension_semantics<parallel>], iteration_bounds = array<i64: 1>, scalar_prefetch = 0 : i64, scratch_operands = 0 : i64, tpu.core_type = #tpu.core_type<tc>, window_params = [{transform_indices = @transform_0, window_bounds = array<i64: 8, 32>}, {pipeline_mode = #tpu.pipeline_mode<synchronous>, transform_indices = @transform_1, window_bounds = array<i64: 32, 256>}, {pipeline_mode = #tpu.pipeline_mode<synchronous>, transform_indices = @transform_2, window_bounds = array<i64: 1, 256>}, {pipeline_mode = #tpu.pipeline_mode<synchronous>, transform_indices = @transform_3, window_bounds = array<i64: 256, 256>}, {pipeline_mode = #tpu.pipeline_mode<synchronous>, transform_indices = @transform_4, window_bounds = array<i64: 1, 256>}, {transform_indices = @transform_5, window_bounds = array<i64: 8, 256>}]} {
    %c0 = arith.constant 0 : index
    %c0_0 = arith.constant 0 : index
    %0 = vector.load %arg1[%c0, %c0_0] : memref<8x32xf32, #tpu.memory_space<vmem>>, vector<8x32xf32>
    %1 = arith.truncf %0 : vector<8x32xf32> to vector<8x32xbf16>
    %cst = arith.constant 0.000000e+00 : f32
    %2 = vector.broadcast %cst : f32 to vector<8x256xf32>
    %c0_i32 = arith.constant 0 : i32
    %c256_i32 = arith.constant 256 : i32
    %3 = arith.muli %c0_i32, %c256_i32 : i32
    %4 = tpu.assume_multiple %3, 256 : i32
    %c0_1 = arith.constant 0 : index
    %5 = arith.index_cast %4 : i32 to index
    %6 = vector.load %arg2[%c0_1, %5] : memref<32x256xbf16, #tpu.memory_space<vmem>>, vector<32x256xbf16>
    %cst_2 = arith.constant dense<0.000000e+00> : vector<8x256xf32>
    %7 = tpu.matmul %1, %6, %cst_2 {dimension_numbers = #tpu.dot_dimension_numbers<[1], [0], [0], [1], [0, 0, 1, 1], [], []>} : vector<8x32xbf16>, vector<32x256xbf16>, vector<8x256xf32> -> vector<8x256xf32>
    %c0_3 = arith.constant 0 : index
    %8 = arith.index_cast %4 : i32 to index
    %9 = vector.load %arg3[%c0_3, %8] : memref<1x256xf32, #tpu.memory_space<vmem>>, vector<1x256xf32>
    %10 = vector.broadcast %9 : vector<1x256xf32> to vector<8x256xf32>
    %11 = arith.addf %7, %10 : vector<8x256xf32>
    %cst_4 = arith.constant 0.000000e+00 : f32
    %12 = vector.broadcast %cst_4 : f32 to vector<8x256xf32>
    %13 = arith.maximumf %11, %12 : vector<8x256xf32>
    %14 = arith.truncf %13 : vector<8x256xf32> to vector<8x256xbf16>
    %15 = arith.index_cast %4 : i32 to index
    %c0_5 = arith.constant 0 : index
    %16 = vector.load %arg4[%15, %c0_5] : memref<256x256xbf16, #tpu.memory_space<vmem>>, vector<256x256xbf16>
    %cst_6 = arith.constant dense<0.000000e+00> : vector<8x256xf32>
    %17 = tpu.matmul %14, %16, %cst_6 {dimension_numbers = #tpu.dot_dimension_numbers<[1], [0], [0], [1], [0, 0, 1, 1], [], []>} : vector<8x256xbf16>, vector<256x256xbf16>, vector<8x256xf32> -> vector<8x256xf32>
    %18 = arith.addf %2, %17 : vector<8x256xf32>
    %c1_i32 = arith.constant 1 : i32
    %c0_7 = arith.constant 0 : index
    %c0_8 = arith.constant 0 : index
    %19 = vector.load %arg5[%c0_7, %c0_8] : memref<1x256xf32, #tpu.memory_space<vmem>>, vector<1x256xf32>
    %20 = vector.broadcast %19 : vector<1x256xf32> to vector<8x256xf32>
    %21 = arith.addf %18, %20 : vector<8x256xf32>
    %cst_9 = arith.constant 0.000000e+00 : f32
    %22 = vector.broadcast %cst_9 : f32 to vector<8x256xf32>
    %23 = arith.maximumf %21, %22 : vector<8x256xf32>
    %c0_10 = arith.constant 0 : index
    %c0_11 = arith.constant 0 : index
    %24 = vector.load %arg6[%c0_10, %c0_11] : memref<8x256xf32, #tpu.memory_space<vmem>>, vector<8x256xf32>
    tpu.vector_store %arg6[%c0_10, %c0_11], %23 {strides = array<i32>} : memref<8x256xf32, #tpu.memory_space<vmem>>, vector<8x256xf32>,
    return
  }
  func.func @transform_0(%arg0: i32) -> (i32, i32) {
    %c0_i32 = arith.constant 0 : i32
    %c0_i32_0 = arith.constant 0 : i32
    return %arg0, %c0_i32 : i32, i32
  }
  func.func @transform_1(%arg0: i32) -> (i32, i32) {
    %c0_i32 = arith.constant 0 : i32
    %c0_i32_0 = arith.constant 0 : i32
    %c0_i32_1 = arith.constant 0 : i32
    return %c0_i32, %c0_i32_0 : i32, i32
  }
  func.func @transform_2(%arg0: i32) -> (i32, i32) {
    %c0_i32 = arith.constant 0 : i32
    %c0_i32_0 = arith.constant 0 : i32
    %c0_i32_1 = arith.constant 0 : i32
    return %c0_i32, %c0_i32_0 : i32, i32
  }
  func.func @transform_3(%arg0: i32) -> (i32, i32) {
    %c0_i32 = arith.constant 0 : i32
    %c0_i32_0 = arith.constant 0 : i32
    %c0_i32_1 = arith.constant 0 : i32
    return %c0_i32, %c0_i32_0 : i32, i32
  }
  func.func @transform_4(%arg0: i32) -> (i32, i32) {
    %c0_i32 = arith.constant 0 : i32
    %c0_i32_0 = arith.constant 0 : i32
    %c0_i32_1 = arith.constant 0 : i32
    return %c0_i32, %c0_i32_0 : i32, i32
  }
  func.func @transform_5(%arg0: i32) -> (i32, i32) {
    %c0_i32 = arith.constant 0 : i32
    %c0_i32_0 = arith.constant 0 : i32
    return %arg0, %c0_i32 : i32, i32
  }
}

</mosaic_0001>

<llo_original>
// kernel: tpu_custom_call.1
$region0: #{tpu_custom_call.1}
  #allocation0 [shape = 'u32[]', space=smem, size = 0x4, offset = 0x4, fixed_abs, tag = 'smem constant byte address 0x4 - core index']
  #allocation1 [shape = 'u32[144,128]{1,0:T(1,128)}', space=vmem, size = 0x12000, scoped, tag = 'internal scratch']
  %s0 = inlined_call_operand.hbm [shape: f32[8,32], index: 0, kind: input, shape index: {}]
  %s1 = inlined_call_operand.hbm [shape: bf16[32,256], index: 1, kind: input, shape index: {}]
  %s2 = inlined_call_operand.vmem [shape: f32[1,256], index: 2, kind: input, shape index: {}]
  %s3 = inlined_call_operand.hbm [shape: bf16[256,256], index: 3, kind: input, shape index: {}]
  %s4 = inlined_call_operand.vmem [shape: f32[1,256], index: 4, kind: input, shape index: {}]
  %s5 = inlined_call_operand.hbm [shape: f32[8,256], index: 5, kind: output, shape index: {}]
  %s6 = sld [smem:[#allocation0]]
  $region42: #{tpu_custom_call.1} parent=0
    _
  %s8 = ssub.s32 1, %s6
  %s9 = scalar_select 0, %s8, %s6
  $region1: #{tpu_custom_call.1} parent=0
    #allocation2 [shape = 'u8[4096]{0}', space=vmem, size = 0x1000, scoped, tag = 'input window, operand 0, single buffered']
    #allocation3 [shape = 's32[1]{0}', space=sflag, size = 0x4, scoped, tag = 'scoped memory for tpu_custom_call.1']
    #allocation4 [shape = 's32[1]{0}', space=sflag, size = 0x4, scoped, tag = 'scoped memory for tpu_custom_call.1']
    #allocation5 [shape = 'u8[16384]{0}', space=vmem, size = 0x4000, scoped, tag = 'input window, operand 1, single buffered']
    #allocation6 [shape = 's32[1]{0}', space=sflag, size = 0x4, scoped, tag = 'scoped memory for tpu_custom_call.1']
    #allocation7 [shape = 'u8[131072]{0}', space=vmem, size = 0x20000, scoped, tag = 'input window, operand 3, single buffered']
    #allocation8 [shape = 'u8[8192]{0}', space=vmem, size = 0x2000, scoped, tag = 'output window, operand 0, single buffered']
    %10 = vsyncpa [#allocation3], 0
    %11 = vsyncpa [#allocation6], 0
    %12 = vsyncpa [#allocation4], 0
    // Predicated region
    $region2: #{tpu_custom_call.1} parent=1 // pred_check
      _
    $region3: #{tpu_custom_call.1} parent=1 // pred_check_branch
      %14 = sbr.rel (0) target = $region5
    $region4: #{tpu_custom_call.1} parent=1 // pred_region
      %s16 = ssub.s32 128, 128
      %17 = vsyncadd [#allocation3], %s16
      %s19 = sshll.u32 [#allocation2], 4
      %s20 = int_to_ptr.vmem [resolvable:$true] %s19
      %22 = dma.hbm_to_vmem [thread:$0]  %s0, 128, %s20, [#allocation3]
    $region5: #{tpu_custom_call.1} parent=1 // pred_fallthru
      _
    // Predicated region
    $region6: #{tpu_custom_call.1} parent=1 // pred_check
      _
    $region7: #{tpu_custom_call.1} parent=1 // pred_check_branch
      %24 = sbr.rel (0) target = $region9
    $region8: #{tpu_custom_call.1} parent=1 // pred_region
      %s26 = ssub.s32 512, 512
      %27 = vsyncadd [#allocation6], %s26
      %s28 = sshll.u32 [#allocation5], 4
      %s29 = int_to_ptr.vmem [resolvable:$true] %s28
      %34 = dma.hbm_to_vmem [thread:$0]  %s1, 512, %s29, [#allocation6], 128, 128, 8
    $region9: #{tpu_custom_call.1} parent=1 // pred_fallthru
      _
    // Predicated region
    $region10: #{tpu_custom_call.1} parent=1 // pred_check
      _
    $region11: #{tpu_custom_call.1} parent=1 // pred_check_branch
      %36 = sbr.rel (0) target = $region13
    $region12: #{tpu_custom_call.1} parent=1 // pred_region
      _
    $region13: #{tpu_custom_call.1} parent=1 // pred_fallthru
      _
    // Predicated region
    $region14: #{tpu_custom_call.1} parent=1 // pred_check
      _
    $region15: #{tpu_custom_call.1} parent=1 // pred_check_branch
      %38 = sbr.rel (0) target = $region17
    $region16: #{tpu_custom_call.1} parent=1 // pred_region
      %s40 = ssub.s32 4096, 4096
      %41 = vsyncadd [#allocation6], %s40
      %s42 = sshll.u32 [#allocation7], 4
      %s43 = int_to_ptr.vmem [resolvable:$true] %s42
      %48 = dma.hbm_to_vmem [thread:$0]  %s3, 4096, %s43, [#allocation6], 128, 128, 8
    $region17: #{tpu_custom_call.1} parent=1 // pred_fallthru
      _
    // Predicated region
    $region18: #{tpu_custom_call.1} parent=1 // pred_check
      _
    $region19: #{tpu_custom_call.1} parent=1 // pred_check_branch
      %50 = sbr.rel (0) target = $region21
    $region20: #{tpu_custom_call.1} parent=1 // pred_region
      _
    $region21: #{tpu_custom_call.1} parent=1 // pred_fallthru
      _
    // Predicated region
    $region22: #{tpu_custom_call.1} parent=1 // pred_check
      _
    $region23: #{tpu_custom_call.1} parent=1 // pred_check_branch
      %52 = sbr.rel (0) target = $region25
    $region24: #{tpu_custom_call.1} parent=1 // pred_region
      %53 = dma.done [#allocation3], 128
    $region25: #{tpu_custom_call.1} parent=1 // pred_fallthru
      _
    // Predicated region
    $region26: #{tpu_custom_call.1} parent=1 // pred_check
      _
    $region27: #{tpu_custom_call.1} parent=1 // pred_check_branch
      %55 = sbr.rel (0) target = $region29
    $region28: #{tpu_custom_call.1} parent=1 // pred_region
      %56 = dma.done [#allocation6], 512
    $region29: #{tpu_custom_call.1} parent=1 // pred_fallthru
      _
    // Predicated region
    $region30: #{tpu_custom_call.1} parent=1 // pred_check
      _
    $region31: #{tpu_custom_call.1} parent=1 // pred_check_branch
      %58 = sbr.rel (0) target = $region33
    $region32: #{tpu_custom_call.1} parent=1 // pred_region
      %59 = dma.done [#allocation6], 4096
    $region33: #{tpu_custom_call.1} parent=1 // pred_fallthru
      _
    %v61 = vld [vmem:[#allocation2] sm:$0xff]
    %v62 = vpack.c.bf16 %v61, %v61
    %v63 = vld [vmem:[#allocation5] sm:$0xff]
    %v64 = vld [vmem:[#allocation5 + $0x8] sm:$0xff]
    %v65 = vld [vmem:[#allocation5 + $0x10] sm:$0xff]
    %v66 = vld [vmem:[#allocation5 + $0x18] sm:$0xff]
    %v67 = vld [vmem:[%s2] sm:$0x3]
    %v69 = vlaneseq
    %v70 = vshrl.u32 %v69, 7
    %v71 = vsub.s32 0, %v70
    %v72 = vrot.slane %v67, %v71
    %v73 = vlaneseq
    %v74 = vshrl.u32 %v73, 7
    %v75 = vsub.s32 1, %v74
    %v76 = vrot.slane %v67, %v75
    %v83 = vunpack.c.l.b16 %v63
    %v84 = vunpack.c.h.b16 %v63
    %v85 = vunpack.c.l.b16 %v64
    %v86 = vunpack.c.h.b16 %v64
    %v87 = vunpack.c.l.b16 %v65
    %v88 = vunpack.c.h.b16 %v65
    %v89 = vunpack.c.l.b16 %v66
    %v90 = vunpack.c.h.b16 %v66
    %v91 = vpack.c.b16 %v85, %v83
    %v92 = vpack.c.b16 %v86, %v84
    %v93 = vpack.c.b16 %v89, %v87
    %v94 = vpack.c.b16 %v90, %v88
    %vm99 = vcmask 261120
    %v101 = vsel %vm99, %v62, 0
    %103 = vmatprep.subr.bf16.mxu0 %v92
    %104 = vmatpush1.bf16.msra.mxu0 %v91
    %105 = vmatprep.subr.bf16.mxu0 %v94
    %106 = vmatpush1.bf16.msra.mxu0 %v93
    %107 = vmatprep.subr.bf16.mxu0 0
    %108 = vmatpush1.bf16.msra.mxu0 0
    %109 = vmatprep.subr.bf16.mxu0 0
    %110 = vmatpush1.bf16.msra.mxu0 0
    %111 = vmatprep.subr.bf16.mxu0 0
    %112 = vmatpush1.bf16.msra.mxu0 0
    %113 = vmatprep.subr.bf16.mxu0 0
    %114 = vmatpush1.bf16.msra.mxu0 0
    %115 = vmatprep.subr.bf16.mxu0 0
    %116 = vmatpush1.bf16.msra.mxu0 0
    %117 = vmatprep.subr.bf16.mxu0 0
    %118 = vmatpush1.bf16.msra.mxu0 0
    %119 = vmatprep.subr.bf16.mxu0 0
    %120 = vmatpush1.bf16.msra.mxu0 0
    %121 = vmatprep.subr.bf16.mxu0 0
    %122 = vmatpush1.bf16.msra.mxu0 0
    %123 = vmatprep.subr.bf16.mxu0 0
    %124 = vmatpush1.bf16.msra.mxu0 0
    %125 = vmatprep.subr.bf16.mxu0 0
    %126 = vmatpush1.bf16.msra.mxu0 0
    %127 = vmatprep.subr.bf16.mxu0 0
    %128 = vmatpush1.bf16.msra.mxu0 0
    %129 = vmatprep.subr.bf16.mxu0 0
    %130 = vmatpush1.bf16.msra.mxu0 0
    %131 = vmatprep.subr.bf16.mxu0 0
    %132 = vmatpush1.bf16.msra.mxu0 0
    %133 = vmatprep.subr.bf16.mxu0 0
    %134 = vmatpush1.bf16.msra.mxu0 0
    %135 = vmatprep.mubr.bf16.mxu0 0
    %136 = vmatmul.mubr.bf16.gmra.mrb[0].mxu0 %v101
    %v137 = vpop.f32.mrb[0].mxu0
    %v138 = vadd.f32 %v72, %v137
    %v139 = vpop.f32.mrb[0].mxu0
    %v140 = vadd.f32 %v76, %v139
    %v141 = vpop.f32.mrb[0].mxu0
    %v142 = vpop.f32.mrb[0].mxu0
    %143 = vdwg.mxu0
    %v144 = vmax.f32 %v138, 0.0
    %v145 = vmax.f32 %v140, 0.0
    %v146 = vpack.c.bf16 %v144, %v144
    %v147 = vpack.c.bf16 %v145, %v145
    %s148 = smul.u32 0, 2
    %s149 = smul.addr %s148, 4
    %s150 = scalar_lea.vmem [#allocation7], %s149
    %v151 = vld [vmem:[%s150] sm:$0xff]
    %v152 = vld [vmem:[%s150 + $0x8] sm:$0xff]
    %v153 = vld [vmem:[%s150 + $0x10] sm:$0xff]
    %v154 = vld [vmem:[%s150 + $0x18] sm:$0xff]
    %v155 = vld [vmem:[%s150 + $0x20] sm:$0xff]
    %v156 = vld [vmem:[%s150 + $0x28] sm:$0xff]
    %v157 = vld [vmem:[%s150 + $0x30] sm:$0xff]
    %v158 = vld [vmem:[%s150 + $0x38] sm:$0xff]
    %v159 = vld [vmem:[%s150 + $0x40] sm:$0xff]
    %v160 = vld [vmem:[%s150 + $0x48] sm:$0xff]
    %v161 = vld [vmem:[%s150 + $0x50] sm:$0xff]
    %v162 = vld [vmem:[%s150 + $0x58] sm:$0xff]
    %v163 = vld [vmem:[%s150 + $0x60] sm:$0xff]
    %v164 = vld [vmem:[%s150 + $0x68] sm:$0xff]
    %v165 = vld [vmem:[%s150 + $0x70] sm:$0xff]
    %v166 = vld [vmem:[%s150 + $0x78] sm:$0xff]
    %v167 = vld [vmem:[%s150 + $0x80] sm:$0xff]
    %v168 = vld [vmem:[%s150 + $0x88] sm:$0xff]
    %v169 = vld [vmem:[%s150 + $0x90] sm:$0xff]
    %v170 = vld [vmem:[%s150 + $0x98] sm:$0xff]
    %v171 = vld [vmem:[%s150 + $0xa0] sm:$0xff]
    %v172 = vld [vmem:[%s150 + $0xa8] sm:$0xff]
    %v173 = vld [vmem:[%s150 + $0xb0] sm:$0xff]
    %v174 = vld [vmem:[%s150 + $0xb8] sm:$0xff]
    %v175 = vld [vmem:[%s150 + $0xc0] sm:$0xff]
    %v176 = vld [vmem:[%s150 + $0xc8] sm:$0xff]
    %v177 = vld [vmem:[%s150 + $0xd0] sm:$0xff]
    %v178 = vld [vmem:[%s150 + $0xd8] sm:$0xff]
    %v179 = vld [vmem:[%s150 + $0xe0] sm:$0xff]
    %v180 = vld [vmem:[%s150 + $0xe8] sm:$0xff]
    %v181 = vld [vmem:[%s150 + $0xf0] sm:$0xff]
    %v182 = vld [vmem:[%s150 + $0xf8] sm:$0xff]
    %v183 = vld [vmem:[%s4] sm:$0x3]
    %v185 = vlaneseq
    %v186 = vshrl.u32 %v185, 7
    %v187 = vsub.s32 0, %v186
    %v188 = vrot.slane %v183, %v187
    %v189 = vlaneseq
    %v190 = vshrl.u32 %v189, 7
    %v191 = vsub.s32 1, %v190
    %v192 = vrot.slane %v183, %v191
    %v227 = vunpack.c.l.b16 %v151
    %v228 = vunpack.c.h.b16 %v151
    %v229 = vunpack.c.l.b16 %v152
    %v230 = vunpack.c.h.b16 %v152
    %v231 = vunpack.c.l.b16 %v153
    %v232 = vunpack.c.h.b16 %v153
    %v233 = vunpack.c.l.b16 %v154
    %v234 = vunpack.c.h.b16 %v154
    %v235 = vunpack.c.l.b16 %v155
    %v236 = vunpack.c.h.b16 %v155
    %v237 = vunpack.c.l.b16 %v156
    %v238 = vunpack.c.h.b16 %v156
    %v239 = vunpack.c.l.b16 %v157
    %v240 = vunpack.c.h.b16 %v157
    %v241 = vunpack.c.l.b16 %v158
    %v242 = vunpack.c.h.b16 %v158
    %v243 = vunpack.c.l.b16 %v159
    %v244 = vunpack.c.h.b16 %v159
    %v245 = vunpack.c.l.b16 %v160
    %v246 = vunpack.c.h.b16 %v160
    %v247 = vunpack.c.l.b16 %v161
    %v248 = vunpack.c.h.b16 %v161
    %v249 = vunpack.c.l.b16 %v162
    %v250 = vunpack.c.h.b16 %v162
    %v251 = vunpack.c.l.b16 %v163
    %v252 = vunpack.c.h.b16 %v163
    %v253 = vunpack.c.l.b16 %v164
    %v254 = vunpack.c.h.b16 %v164
    %v255 = vunpack.c.l.b16 %v165
    %v256 = vunpack.c.h.b16 %v165
    %v257 = vunpack.c.l.b16 %v166
    %v258 = vunpack.c.h.b16 %v166
    %v259 = vunpack.c.l.b16 %v167
    %v260 = vunpack.c.h.b16 %v167
    %v261 = vunpack.c.l.b16 %v168
    %v262 = vunpack.c.h.b16 %v168
    %v263 = vunpack.c.l.b16 %v169
    %v264 = vunpack.c.h.b16 %v169
    %v265 = vunpack.c.l.b16 %v170
    %v266 = vunpack.c.h.b16 %v170
    %v267 = vunpack.c.l.b16 %v171
    %v268 = vunpack.c.h.b16 %v171
    %v269 = vunpack.c.l.b16 %v172
    %v270 = vunpack.c.h.b16 %v172
    %v271 = vunpack.c.l.b16 %v173
    %v272 = vunpack.c.h.b16 %v173
    %v273 = vunpack.c.l.b16 %v174
    %v274 = vunpack.c.h.b16 %v174
    %v275 = vunpack.c.l.b16 %v175
    %v276 = vunpack.c.h.b16 %v175
    %v277 = vunpack.c.l.b16 %v176
    %v278 = vunpack.c.h.b16 %v176
    %v279 = vunpack.c.l.b16 %v177
    %v280 = vunpack.c.h.b16 %v177
    %v281 = vunpack.c.l.b16 %v178
    %v282 = vunpack.c.h.b16 %v178
    %v283 = vunpack.c.l.b16 %v179
    %v284 = vunpack.c.h.b16 %v179
    %v285 = vunpack.c.l.b16 %v180
    %v286 = vunpack.c.h.b16 %v180
    %v287 = vunpack.c.l.b16 %v181
    %v288 = vunpack.c.h.b16 %v181
    %v289 = vunpack.c.l.b16 %v182
    %v290 = vunpack.c.h.b16 %v182
    %v291 = vpack.c.b16 %v229, %v227
    %v292 = vpack.c.b16 %v230, %v228
    %v293 = vpack.c.b16 %v233, %v231
    %v294 = vpack.c.b16 %v234, %v232
    %v295 = vpack.c.b16 %v237, %v235
    %v296 = vpack.c.b16 %v238, %v236
    %v297 = vpack.c.b16 %v241, %v239
    %v298 = vpack.c.b16 %v242, %v240
    %v299 = vpack.c.b16 %v245, %v243
    %v300 = vpack.c.b16 %v246, %v244
    %v301 = vpack.c.b16 %v249, %v247
    %v302 = vpack.c.b16 %v250, %v248
    %v303 = vpack.c.b16 %v253, %v251
    %v304 = vpack.c.b16 %v254, %v252
    %v305 = vpack.c.b16 %v257, %v255
    %v306 = vpack.c.b16 %v258, %v256
    %v307 = vpack.c.b16 %v261, %v259
    %v308 = vpack.c.b16 %v262, %v260
    %v309 = vpack.c.b16 %v265, %v263
    %v310 = vpack.c.b16 %v266, %v264
    %v311 = vpack.c.b16 %v269, %v267
    %v312 = vpack.c.b16 %v270, %v268
    %v313 = vpack.c.b16 %v273, %v271
    %v314 = vpack.c.b16 %v274, %v272
    %v315 = vpack.c.b16 %v277, %v275
    %v316 = vpack.c.b16 %v278, %v276
    %v317 = vpack.c.b16 %v281, %v279
    %v318 = vpack.c.b16 %v282, %v280
    %v319 = vpack.c.b16 %v285, %v283
    %v320 = vpack.c.b16 %v286, %v284
    %v321 = vpack.c.b16 %v289, %v287
    %v322 = vpack.c.b16 %v290, %v288
    %355 = vmatprep.subr.bf16.mxu0 %v292
    %356 = vmatpush1.bf16.msra.mxu0 %v291
    %357 = vmatprep.subr.bf16.mxu0 %v294
    %358 = vmatpush1.bf16.msra.mxu0 %v293
    %359 = vmatprep.subr.bf16.mxu0 %v296
    %360 = vmatpush1.bf16.msra.mxu0 %v295
    %361 = vmatprep.subr.bf16.mxu0 %v298
    %362 = vmatpush1.bf16.msra.mxu0 %v297
    %363 = vmatprep.subr.bf16.mxu0 %v300
    %364 = vmatpush1.bf16.msra.mxu0 %v299
    %365 = vmatprep.subr.bf16.mxu0 %v302
    %366 = vmatpush1.bf16.msra.mxu0 %v301
    %367 = vmatprep.subr.bf16.mxu0 %v304
    %368 = vmatpush1.bf16.msra.mxu0 %v303
    %369 = vmatprep.subr.bf16.mxu0 %v306
    %370 = vmatpush1.bf16.msra.mxu0 %v305
    %371 = vmatprep.subr.bf16.mxu0 %v308
    %372 = vmatpush1.bf16.msra.mxu0 %v307
    %373 = vmatprep.subr.bf16.mxu0 %v310
    %374 = vmatpush1.bf16.msra.mxu0 %v309
    %375 = vmatprep.subr.bf16.mxu0 %v312
    %376 = vmatpush1.bf16.msra.mxu0 %v311
    %377 = vmatprep.subr.bf16.mxu0 %v314
    %378 = vmatpush1.bf16.msra.mxu0 %v313
    %379 = vmatprep.subr.bf16.mxu0 %v316
    %380 = vmatpush1.bf16.msra.mxu0 %v315
    %381 = vmatprep.subr.bf16.mxu0 %v318
    %382 = vmatpush1.bf16.msra.mxu0 %v317
    %383 = vmatprep.subr.bf16.mxu0 %v320
    %384 = vmatpush1.bf16.msra.mxu0 %v319
    %385 = vmatprep.subr.bf16.mxu0 %v322
    %386 = vmatpush1.bf16.msra.mxu0 %v321
    %387 = vmatprep.mubr.bf16.mxu0 %v147
    %388 = vmatmul.mubr.bf16.gmra.mrb[0].mxu0 %v146
    %v389 = vpop.f32.mrb[0].mxu0
    %v390 = vadd.f32 %v188, %v389
    %v391 = vpop.f32.mrb[0].mxu0
    %v392 = vadd.f32 %v192, %v391
    %v393 = vpop.f32.mrb[0].mxu0
    %v394 = vpop.f32.mrb[0].mxu0
    %395 = vdwg.mxu0
    %v396 = vmax.f32 %v390, 0.0
    %v397 = vmax.f32 %v392, 0.0
    %398 = vst [vmem:[#allocation8] sm:$0xff] %v396
    %399 = vst [vmem:[#allocation8 + $0x8] sm:$0xff] %v397
    // Predicated region
    $region34: #{tpu_custom_call.1} parent=1 // pred_check
      _
    $region35: #{tpu_custom_call.1} parent=1 // pred_check_branch
      %401 = sbr.rel (0) target = $region37
    $region36: #{tpu_custom_call.1} parent=1 // pred_region
      %s403 = ssub.s32 256, 256
      %404 = vsyncadd [#allocation4], %s403
      %s406 = sshll.u32 [#allocation8], 4
      %s407 = int_to_ptr.vmem [resolvable:$true] %s406
      %409 = dma.vmem_to_hbm [thread:$0]  %s407, 256, %s5, [#allocation4]
    $region37: #{tpu_custom_call.1} parent=1 // pred_fallthru
      _
    // Predicated region
    $region38: #{tpu_custom_call.1} parent=1 // pred_check
      _
    $region39: #{tpu_custom_call.1} parent=1 // pred_check_branch
      %411 = sbr.rel (0) target = $region41
    $region40: #{tpu_custom_call.1} parent=1 // pred_region
      %412 = dma.done [#allocation4], 256
    $region41: #{tpu_custom_call.1} parent=1 // pred_fallthru
      _
    %413 = vsyncpa [#allocation3], 1
    %414 = vsyncpa [#allocation6], 1
    %415 = vsyncpa [#allocation4], 1

// kernel: tpu_custom_call.1
$region0: #{tpu_custom_call.1}
  #allocation0 [shape = 'u32[]', space=smem, size = 0x4, offset = 0x4, fixed_abs, tag = 'smem constant byte address 0x4 - core index']
  #allocation1 [shape = 'u32[144,128]{1,0:T(1,128)}', space=vmem, size = 0x12000, scoped, tag = 'internal scratch']
  %s0 = inlined_call_operand.hbm [shape: f32[8,32], index: 0, kind: input, shape index: {}]
  %s1 = inlined_call_operand.hbm [shape: bf16[32,256], index: 1, kind: input, shape index: {}]
  %s2 = inlined_call_operand.vmem [shape: f32[1,256], index: 2, kind: input, shape index: {}]
  %s3 = inlined_call_operand.hbm [shape: bf16[256,256], index: 3, kind: input, shape index: {}]
  %s4 = inlined_call_operand.vmem [shape: f32[1,256], index: 4, kind: input, shape index: {}]
  %s5 = inlined_call_operand.hbm [shape: f32[8,256], index: 5, kind: output, shape index: {}]
  %s6 = sld [smem:[#allocation0]]
  $region42: #{tpu_custom_call.1} parent=0
    _
  %s8 = ssub.s32 1, %s6
  %s9 = scalar_select 0, %s8, %s6
  $region1: #{tpu_custom_call.1} parent=0
    #allocation2 [shape = 'u8[4096]{0}', space=vmem, size = 0x1000, scoped, tag = 'input window, operand 0, single buffered']
    #allocation3 [shape = 's32[1]{0}', space=sflag, size = 0x4, scoped, tag = 'scoped memory for tpu_custom_call.1']
    #allocation4 [shape = 's32[1]{0}', space=sflag, size = 0x4, scoped, tag = 'scoped memory for tpu_custom_call.1']
    #allocation5 [shape = 'u8[16384]{0}', space=vmem, size = 0x4000, scoped, tag = 'input window, operand 1, single buffered']
    #allocation6 [shape = 's32[1]{0}', space=sflag, size = 0x4, scoped, tag = 'scoped memory for tpu_custom_call.1']
    #allocation7 [shape = 'u8[131072]{0}', space=vmem, size = 0x20000, scoped, tag = 'input window, operand 3, single buffered']
    #allocation8 [shape = 'u8[8192]{0}', space=vmem, size = 0x2000, scoped, tag = 'output window, operand 0, single buffered']
    %10 = vsyncpa [#allocation3], 0
    %11 = vsyncpa [#allocation6], 0
    %12 = vsyncpa [#allocation4], 0
    // Predicated region
    $region2: #{tpu_custom_call.1} parent=1 // pred_check
      _
    $region3: #{tpu_custom_call.1} parent=1 // pred_check_branch
      %14 = sbr.rel (0) target = $region5
    $region4: #{tpu_custom_call.1} parent=1 // pred_region
      %s16 = ssub.s32 128, 128
      %17 = vsyncadd [#allocation3], %s16
      %s19 = sshll.u32 [#allocation2], 4
      %s20 = int_to_ptr.vmem [resolvable:$true] %s19
      %22 = dma.hbm_to_vmem [thread:$0]  %s0, 128, %s20, [#allocation3]
    $region5: #{tpu_custom_call.1} parent=1 // pred_fallthru
      _
    // Predicated region
    $region6: #{tpu_custom_call.1} parent=1 // pred_check
      _
    $region7: #{tpu_custom_call.1} parent=1 // pred_check_branch
      %24 = sbr.rel (0) target = $region9
    $region8: #{tpu_custom_call.1} parent=1 // pred_region
      %s26 = ssub.s32 512, 512
      %27 = vsyncadd [#allocation6], %s26
      %s28 = sshll.u32 [#allocation5], 4
      %s29 = int_to_ptr.vmem [resolvable:$true] %s28
      %34 = dma.hbm_to_vmem [thread:$0]  %s1, 512, %s29, [#allocation6], 128, 128, 8
    $region9: #{tpu_custom_call.1} parent=1 // pred_fallthru
      _
    // Predicated region
    $region10: #{tpu_custom_call.1} parent=1 // pred_check
      _
    $region11: #{tpu_custom_call.1} parent=1 // pred_check_branch
      %36 = sbr.rel (0) target = $region13
    $region12: #{tpu_custom_call.1} parent=1 // pred_region
      _
    $region13: #{tpu_custom_call.1} parent=1 // pred_fallthru
      _
    // Predicated region
    $region14: #{tpu_custom_call.1} parent=1 // pred_check
      _
    $region15: #{tpu_custom_call.1} parent=1 // pred_check_branch
      %38 = sbr.rel (0) target = $region17
    $region16: #{tpu_custom_call.1} parent=1 // pred_region
      %s40 = ssub.s32 4096, 4096
      %41 = vsyncadd [#allocation6], %s40
      %s42 = sshll.u32 [#allocation7], 4
      %s43 = int_to_ptr.vmem [resolvable:$true] %s42
      %48 = dma.hbm_to_vmem [thread:$0]  %s3, 4096, %s43, [#allocation6], 128, 128, 8
    $region17: #{tpu_custom_call.1} parent=1 // pred_fallthru
      _
    // Predicated region
    $region18: #{tpu_custom_call.1} parent=1 // pred_check
      _
    $region19: #{tpu_custom_call.1} parent=1 // pred_check_branch
      %50 = sbr.rel (0) target = $region21
    $region20: #{tpu_custom_call.1} parent=1 // pred_region
      _
    $region21: #{tpu_custom_call.1} parent=1 // pred_fallthru
      _
    // Predicated region
    $region22: #{tpu_custom_call.1} parent=1 // pred_check
      _
    $region23: #{tpu_custom_call.1} parent=1 // pred_check_branch
      %52 = sbr.rel (0) target = $region25
    $region24: #{tpu_custom_call.1} parent=1 // pred_region
      %53 = dma.done [#allocation3], 128
    $region25: #{tpu_custom_call.1} parent=1 // pred_fallthru
      _
    // Predicated region
    $region26: #{tpu_custom_call.1} parent=1 // pred_check
      _
    $region27: #{tpu_custom_call.1} parent=1 // pred_check_branch
      %55 = sbr.rel (0) target = $region29
    $region28: #{tpu_custom_call.1} parent=1 // pred_region
      %56 = dma.done [#allocation6], 512
    $region29: #{tpu_custom_call.1} parent=1 // pred_fallthru
      _
    // Predicated region
    $region30: #{tpu_custom_call.1} parent=1 // pred_check
      _
    $region31: #{tpu_custom_call.1} parent=1 // pred_check_branch
      %58 = sbr.rel (0) target = $region33
    $region32: #{tpu_custom_call.1} parent=1 // pred_region
      %59 = dma.done [#allocation6], 4096
    $region33: #{tpu_custom_call.1} parent=1 // pred_fallthru
      _
    %v61 = vld [vmem:[#allocation2] sm:$0xff]
    %v62 = vpack.c.bf16 %v61, %v61
    %v63 = vld [vmem:[#allocation5] sm:$0xff]
    %v64 = vld [vmem:[#allocation5 + $0x8] sm:$0xff]
    %v65 = vld [vmem:[#allocation5 + $0x10] sm:$0xff]
    %v66 = vld [vmem:[#allocation5 + $0x18] sm:$0xff]
    %v67 = vld [vmem:[%s2] sm:$0x3]
    %v69 = vlaneseq
    %v70 = vshrl.u32 %v69, 7
    %v71 = vsub.s32 0, %v70
    %v72 = vrot.slane %v67, %v71
    %v73 = vlaneseq
    %v74 = vshrl.u32 %v73, 7
    %v75 = vsub.s32 1, %v74
    %v76 = vrot.slane %v67, %v75
    %v83 = vunpack.c.l.b16 %v63
    %v84 = vunpack.c.h.b16 %v63
    %v85 = vunpack.c.l.b16 %v64
    %v86 = vunpack.c.h.b16 %v64
    %v87 = vunpack.c.l.b16 %v65
    %v88 = vunpack.c.h.b16 %v65
    %v89 = vunpack.c.l.b16 %v66
    %v90 = vunpack.c.h.b16 %v66
    %v91 = vpack.c.b16 %v85, %v83
    %v92 = vpack.c.b16 %v86, %v84
    %v93 = vpack.c.b16 %v89, %v87
    %v94 = vpack.c.b16 %v90, %v88
    %vm99 = vcmask 261120
    %v101 = vsel %vm99, %v62, 0
    %103 = vmatprep.subr.bf16.mxu0 %v92
    %104 = vmatpush1.bf16.msra.mxu0 %v91
    %105 = vmatprep.subr.bf16.mxu0 %v94
    %106 = vmatpush1.bf16.msra.mxu0 %v93
    %107 = vmatprep.subr.bf16.mxu0 0
    %108 = vmatpush1.bf16.msra.mxu0 0
    %109 = vmatprep.subr.bf16.mxu0 0
    %110 = vmatpush1.bf16.msra.mxu0 0
    %111 = vmatprep.subr.bf16.mxu0 0
    %112 = vmatpush1.bf16.msra.mxu0 0
    %113 = vmatprep.subr.bf16.mxu0 0
    %114 = vmatpush1.bf16.msra.mxu0 0
    %115 = vmatprep.subr.bf16.mxu0 0
    %116 = vmatpush1.bf16.msra.mxu0 0
    %117 = vmatprep.subr.bf16.mxu0 0
    %118 = vmatpush1.bf16.msra.mxu0 0
    %119 = vmatprep.subr.bf16.mxu0 0
    %120 = vmatpush1.bf16.msra.mxu0 0
    %121 = vmatprep.subr.bf16.mxu0 0
    %122 = vmatpush1.bf16.msra.mxu0 0
    %123 = vmatprep.subr.bf16.mxu0 0
    %124 = vmatpush1.bf16.msra.mxu0 0
    %125 = vmatprep.subr.bf16.mxu0 0
    %126 = vmatpush1.bf16.msra.mxu0 0
    %127 = vmatprep.subr.bf16.mxu0 0
    %128 = vmatpush1.bf16.msra.mxu0 0
    %129 = vmatprep.subr.bf16.mxu0 0
    %130 = vmatpush1.bf16.msra.mxu0 0
    %131 = vmatprep.subr.bf16.mxu0 0
    %132 = vmatpush1.bf16.msra.mxu0 0
    %133 = vmatprep.subr.bf16.mxu0 0
    %134 = vmatpush1.bf16.msra.mxu0 0
    %135 = vmatprep.mubr.bf16.mxu0 0
    %136 = vmatmul.mubr.bf16.gmra.mrb[0].mxu0 %v101
    %v137 = vpop.f32.mrb[0].mxu0
    %v138 = vadd.f32 %v72, %v137
    %v139 = vpop.f32.mrb[0].mxu0
    %v140 = vadd.f32 %v76, %v139
    %v141 = vpop.f32.mrb[0].mxu0
    %v142 = vpop.f32.mrb[0].mxu0
    %143 = vdwg.mxu0
    %v144 = vmax.f32 %v138, 0.0
    %v145 = vmax.f32 %v140, 0.0
    %v146 = vpack.c.bf16 %v144, %v144
    %v147 = vpack.c.bf16 %v145, %v145
    %s148 = smul.u32 0, 2
    %s149 = smul.addr %s148, 4
    %s150 = scalar_lea.vmem [#allocation7], %s149
    %v151 = vld [vmem:[%s150] sm:$0xff]
    %v152 = vld [vmem:[%s150 + $0x8] sm:$0xff]
    %v153 = vld [vmem:[%s150 + $0x10] sm:$0xff]
    %v154 = vld [vmem:[%s150 + $0x18] sm:$0xff]
    %v155 = vld [vmem:[%s150 + $0x20] sm:$0xff]
    %v156 = vld [vmem:[%s150 + $0x28] sm:$0xff]
    %v157 = vld [vmem:[%s150 + $0x30] sm:$0xff]
    %v158 = vld [vmem:[%s150 + $0x38] sm:$0xff]
    %v159 = vld [vmem:[%s150 + $0x40] sm:$0xff]
    %v160 = vld [vmem:[%s150 + $0x48] sm:$0xff]
    %v161 = vld [vmem:[%s150 + $0x50] sm:$0xff]
    %v162 = vld [vmem:[%s150 + $0x58] sm:$0xff]
    %v163 = vld [vmem:[%s150 + $0x60] sm:$0xff]
    %v164 = vld [vmem:[%s150 + $0x68] sm:$0xff]
    %v165 = vld [vmem:[%s150 + $0x70] sm:$0xff]
    %v166 = vld [vmem:[%s150 + $0x78] sm:$0xff]
    %v167 = vld [vmem:[%s150 + $0x80] sm:$0xff]
    %v168 = vld [vmem:[%s150 + $0x88] sm:$0xff]
    %v169 = vld [vmem:[%s150 + $0x90] sm:$0xff]
    %v170 = vld [vmem:[%s150 + $0x98] sm:$0xff]
    %v171 = vld [vmem:[%s150 + $0xa0] sm:$0xff]
    %v172 = vld [vmem:[%s150 + $0xa8] sm:$0xff]
    %v173 = vld [vmem:[%s150 + $0xb0] sm:$0xff]
    %v174 = vld [vmem:[%s150 + $0xb8] sm:$0xff]
    %v175 = vld [vmem:[%s150 + $0xc0] sm:$0xff]
    %v176 = vld [vmem:[%s150 + $0xc8] sm:$0xff]
    %v177 = vld [vmem:[%s150 + $0xd0] sm:$0xff]
    %v178 = vld [vmem:[%s150 + $0xd8] sm:$0xff]
    %v179 = vld [vmem:[%s150 + $0xe0] sm:$0xff]
    %v180 = vld [vmem:[%s150 + $0xe8] sm:$0xff]
    %v181 = vld [vmem:[%s150 + $0xf0] sm:$0xff]
    %v182 = vld [vmem:[%s150 + $0xf8] sm:$0xff]
    %v183 = vld [vmem:[%s4] sm:$0x3]
    %v185 = vlaneseq
    %v186 = vshrl.u32 %v185, 7
    %v187 = vsub.s32 0, %v186
    %v188 = vrot.slane %v183, %v187
    %v189 = vlaneseq
    %v190 = vshrl.u32 %v189, 7
    %v191 = vsub.s32 1, %v190
    %v192 = vrot.slane %v183, %v191
    %v227 = vunpack.c.l.b16 %v151
    %v228 = vunpack.c.h.b16 %v151
    %v229 = vunpack.c.l.b16 %v152
    %v230 = vunpack.c.h.b16 %v152
    %v231 = vunpack.c.l.b16 %v153
    %v232 = vunpack.c.h.b16 %v153
    %v233 = vunpack.c.l.b16 %v154
    %v234 = vunpack.c.h.b16 %v154
    %v235 = vunpack.c.l.b16 %v155
    %v236 = vunpack.c.h.b16 %v155
    %v237 = vunpack.c.l.b16 %v156
    %v238 = vunpack.c.h.b16 %v156
    %v239 = vunpack.c.l.b16 %v157
    %v240 = vunpack.c.h.b16 %v157
    %v241 = vunpack.c.l.b16 %v158
    %v242 = vunpack.c.h.b16 %v158
    %v243 = vunpack.c.l.b16 %v159
    %v244 = vunpack.c.h.b16 %v159
    %v245 = vunpack.c.l.b16 %v160
    %v246 = vunpack.c.h.b16 %v160
    %v247 = vunpack.c.l.b16 %v161
    %v248 = vunpack.c.h.b16 %v161
    %v249 = vunpack.c.l.b16 %v162
    %v250 = vunpack.c.h.b16 %v162
    %v251 = vunpack.c.l.b16 %v163
    %v252 = vunpack.c.h.b16 %v163
    %v253 = vunpack.c.l.b16 %v164
    %v254 = vunpack.c.h.b16 %v164
    %v255 = vunpack.c.l.b16 %v165
    %v256 = vunpack.c.h.b16 %v165
    %v257 = vunpack.c.l.b16 %v166
    %v258 = vunpack.c.h.b16 %v166
    %v259 = vunpack.c.l.b16 %v167
    %v260 = vunpack.c.h.b16 %v167
    %v261 = vunpack.c.l.b16 %v168
    %v262 = vunpack.c.h.b16 %v168
    %v263 = vunpack.c.l.b16 %v169
    %v264 = vunpack.c.h.b16 %v169
    %v265 = vunpack.c.l.b16 %v170
    %v266 = vunpack.c.h.b16 %v170
    %v267 = vunpack.c.l.b16 %v171
    %v268 = vunpack.c.h.b16 %v171
    %v269 = vunpack.c.l.b16 %v172
    %v270 = vunpack.c.h.b16 %v172
    %v271 = vunpack.c.l.b16 %v173
    %v272 = vunpack.c.h.b16 %v173
    %v273 = vunpack.c.l.b16 %v174
    %v274 = vunpack.c.h.b16 %v174
    %v275 = vunpack.c.l.b16 %v175
    %v276 = vunpack.c.h.b16 %v175
    %v277 = vunpack.c.l.b16 %v176
    %v278 = vunpack.c.h.b16 %v176
    %v279 = vunpack.c.l.b16 %v177
    %v280 = vunpack.c.h.b16 %v177
    %v281 = vunpack.c.l.b16 %v178
    %v282 = vunpack.c.h.b16 %v178
    %v283 = vunpack.c.l.b16 %v179
    %v284 = vunpack.c.h.b16 %v179
    %v285 = vunpack.c.l.b16 %v180
    %v286 = vunpack.c.h.b16 %v180
    %v287 = vunpack.c.l.b16 %v181
    %v288 = vunpack.c.h.b16 %v181
    %v289 = vunpack.c.l.b16 %v182
    %v290 = vunpack.c.h.b16 %v182
    %v291 = vpack.c.b16 %v229, %v227
    %v292 = vpack.c.b16 %v230, %v228
    %v293 = vpack.c.b16 %v233, %v231
    %v294 = vpack.c.b16 %v234, %v232
    %v295 = vpack.c.b16 %v237, %v235
    %v296 = vpack.c.b16 %v238, %v236
    %v297 = vpack.c.b16 %v241, %v239
    %v298 = vpack.c.b16 %v242, %v240
    %v299 = vpack.c.b16 %v245, %v243
    %v300 = vpack.c.b16 %v246, %v244
    %v301 = vpack.c.b16 %v249, %v247
    %v302 = vpack.c.b16 %v250, %v248
    %v303 = vpack.c.b16 %v253, %v251
    %v304 = vpack.c.b16 %v254, %v252
    %v305 = vpack.c.b16 %v257, %v255
    %v306 = vpack.c.b16 %v258, %v256
    %v307 = vpack.c.b16 %v261, %v259
    %v308 = vpack.c.b16 %v262, %v260
    %v309 = vpack.c.b16 %v265, %v263
    %v310 = vpack.c.b16 %v266, %v264
    %v311 = vpack.c.b16 %v269, %v267
    %v312 = vpack.c.b16 %v270, %v268
    %v313 = vpack.c.b16 %v273, %v271
    %v314 = vpack.c.b16 %v274, %v272
    %v315 = vpack.c.b16 %v277, %v275
    %v316 = vpack.c.b16 %v278, %v276
    %v317 = vpack.c.b16 %v281, %v279
    %v318 = vpack.c.b16 %v282, %v280
    %v319 = vpack.c.b16 %v285, %v283
    %v320 = vpack.c.b16 %v286, %v284
    %v321 = vpack.c.b16 %v289, %v287
    %v322 = vpack.c.b16 %v290, %v288
    %355 = vmatprep.subr.bf16.mxu0 %v292
    %356 = vmatpush1.bf16.msra.mxu0 %v291
    %357 = vmatprep.subr.bf16.mxu0 %v294
    %358 = vmatpush1.bf16.msra.mxu0 %v293
    %359 = vmatprep.subr.bf16.mxu0 %v296
    %360 = vmatpush1.bf16.msra.mxu0 %v295
    %361 = vmatprep.subr.bf16.mxu0 %v298
    %362 = vmatpush1.bf16.msra.mxu0 %v297
    %363 = vmatprep.subr.bf16.mxu0 %v300
    %364 = vmatpush1.bf16.msra.mxu0 %v299
    %365 = vmatprep.subr.bf16.mxu0 %v302
    %366 = vmatpush1.bf16.msra.mxu0 %v301
    %367 = vmatprep.subr.bf16.mxu0 %v304
    %368 = vmatpush1.bf16.msra.mxu0 %v303
    %369 = vmatprep.subr.bf16.mxu0 %v306
    %370 = vmatpush1.bf16.msra.mxu0 %v305
    %371 = vmatprep.subr.bf16.mxu0 %v308
    %372 = vmatpush1.bf16.msra.mxu0 %v307
    %373 = vmatprep.subr.bf16.mxu0 %v310
    %374 = vmatpush1.bf16.msra.mxu0 %v309
    %375 = vmatprep.subr.bf16.mxu0 %v312
    %376 = vmatpush1.bf16.msra.mxu0 %v311
    %377 = vmatprep.subr.bf16.mxu0 %v314
    %378 = vmatpush1.bf16.msra.mxu0 %v313
    %379 = vmatprep.subr.bf16.mxu0 %v316
    %380 = vmatpush1.bf16.msra.mxu0 %v315
    %381 = vmatprep.subr.bf16.mxu0 %v318
    %382 = vmatpush1.bf16.msra.mxu0 %v317
    %383 = vmatprep.subr.bf16.mxu0 %v320
    %384 = vmatpush1.bf16.msra.mxu0 %v319
    %385 = vmatprep.subr.bf16.mxu0 %v322
    %386 = vmatpush1.bf16.msra.mxu0 %v321
    %387 = vmatprep.mubr.bf16.mxu0 %v147
    %388 = vmatmul.mubr.bf16.gmra.mrb[0].mxu0 %v146
    %v389 = vpop.f32.mrb[0].mxu0
    %v390 = vadd.f32 %v188, %v389
    %v391 = vpop.f32.mrb[0].mxu0
    %v392 = vadd.f32 %v192, %v391
    %v393 = vpop.f32.mrb[0].mxu0
    %v394 = vpop.f32.mrb[0].mxu0
    %395 = vdwg.mxu0
    %v396 = vmax.f32 %v390, 0.0
    %v397 = vmax.f32 %v392, 0.0
    %398 = vst [vmem:[#allocation8] sm:$0xff] %v396
    %399 = vst [vmem:[#allocation8 + $0x8] sm:$0xff] %v397
    // Predicated region
    $region34: #{tpu_custom_call.1} parent=1 // pred_check
      _
    $region35: #{tpu_custom_call.1} parent=1 // pred_check_branch
      %401 = sbr.rel (0) target = $region37
    $region36: #{tpu_custom_call.1} parent=1 // pred_region
      %s403 = ssub.s32 256, 256
      %404 = vsyncadd [#allocation4], %s403
      %s406 = sshll.u32 [#allocation8], 4
      %s407 = int_to_ptr.vmem [resolvable:$true] %s406
      %409 = dma.vmem_to_hbm [thread:$0]  %s407, 256, %s5, [#allocation4]
    $region37: #{tpu_custom_call.1} parent=1 // pred_fallthru
      _
    // Predicated region
    $region38: #{tpu_custom_call.1} parent=1 // pred_check
      _
    $region39: #{tpu_custom_call.1} parent=1 // pred_check_branch
      %411 = sbr.rel (0) target = $region41
    $region40: #{tpu_custom_call.1} parent=1 // pred_region
      %412 = dma.done [#allocation4], 256
    $region41: #{tpu_custom_call.1} parent=1 // pred_fallthru
      _
    %413 = vsyncpa [#allocation3], 1
    %414 = vsyncpa [#allocation6], 1
    %415 = vsyncpa [#allocation4], 1

</llo_original>
